<compile_context>
chip_gen: v7x
topology: tpu7x:2x2x1
jax: 0.10.0
libtpu: 0.0.40
codegen_flags: <defaults>
</compile_context>

<pallas_src>
import jax
import jax.numpy as jnp
from jax.experimental import pallas as pl
from jax.experimental.pallas import tpu as pltpu

_LANE = 128
_COL_CANDIDATES = (8192, 4096, 2048, 1024, 512, 256, 128)


def _squared_relu_kernel(x_ref, o_ref):
    x = x_ref[...]
    r = jnp.maximum(x, 0)          # scalar broadcast; no zero-constant vreg
    o_ref[...] = r * r


def _generation_tuning():
    """Return (target_block_bytes, vmem_limit_bytes) tuned per TPU generation."""
    try:
        kind = jax.devices()[0].device_kind.lower()
    except Exception:
        kind = ""
    if "v7" in kind:      # 64 MiB VMEM, ~3.2 TB/s: bigger blocks, <=~24 MiB resident
        return 6 * 1024 * 1024, 32 * 1024 * 1024
    if "v6" in kind:      # 128 MiB VMEM, ~1.4 TB/s: push toward 90%+ of roofline
        return 8 * 1024 * 1024, 64 * 1024 * 1024
    if "v5" in kind:      # ~0.8 TB/s: 2-4 MiB already sits on the plateau
        return 4 * 1024 * 1024, 32 * 1024 * 1024
    return 4 * 1024 * 1024, 32 * 1024 * 1024


def _pick_cols(n: int, sublane_pack: int):
    """Largest 128-multiple divisor of n, preferring rows % sublane_pack == 0."""
    best = None
    for c in _COL_CANDIDATES:
        if c <= n and n % c == 0:
            if best is None:
                best = c
            if (n // c) % sublane_pack == 0:
                return c
    return best


def squared_relu(x: jax.Array) -> jax.Array:
    """Elementwise squared ReLU: relu(x)**2 (matches torch.pow(torch.relu(x), 2))."""
    orig_shape = x.shape
    dtype = x.dtype
    n = x.size
    if n == 0:
        return x

    itemsize = jnp.dtype(dtype).itemsize
    sublane_pack = max(8, 32 // itemsize)     # 8 for f32, 16 for bf16, 32 for int8
    target_block_bytes, vmem_limit = _generation_tuning()

    cost = pl.CostEstimate(flops=2 * n, transcendentals=0,
                           bytes_accessed=2 * n * itemsize)
    params = pltpu.CompilerParams(dimension_semantics=("parallel",),
                                  vmem_limit_bytes=vmem_limit)

    cols = _pick_cols(n, sublane_pack) if n % _LANE == 0 else None

    if cols is not None:
        # ---- fast path: lane-dense (rows, cols) slab, zero padding ----
        rows = n // cols
        x2d = x.reshape(rows, cols)
        row_bytes = cols * itemsize
        total_bytes = rows * row_bytes

        if total_bytes <= (1 << 20) or rows <= sublane_pack:
            block_rows = rows                              # single block
        else:
            # Size by bytes, then force >= 2 blocks so ("parallel",) can use
            # both v7x TensorCores on medium-sized activations.
            block_rows = (target_block_bytes // row_bytes) // sublane_pack * sublane_pack
            block_rows = max(sublane_pack, block_rows)
            half = max(sublane_pack,
                       (pl.cdiv(rows, 2) // sublane_pack) * sublane_pack)
            block_rows = min(block_rows, half, rows)

        grid = (pl.cdiv(rows, block_rows),)
        out2d = pl.pallas_call(
            _squared_relu_kernel,
            out_shape=jax.ShapeDtypeStruct((rows, cols), dtype),
            grid=grid,
            in_specs=[pl.BlockSpec((block_rows, cols), lambda i: (i, 0))],
            out_specs=pl.BlockSpec((block_rows, cols), lambda i: (i, 0)),
            compiler_params=params,
            cost_estimate=cost,
        )(x2d)
        return out2d.reshape(orig_shape)

    # ---- fallback (n % 128 != 0): view as (1, n), grid over 128-aligned column
    # blocks; Pallas masks the ragged final block.  No pad, no slice, single
    # HBM pass. ----
    x2d = x.reshape(1, n)
    if n * itemsize <= 256 * 1024:
        block_cols = n                                     # full-array block
    else:
        # (1, C) blocks pad to 8 sublanes in VMEM, so keep per-block payload at
        # ~512 KiB (~4 MiB VMEM per buffer, ~16 MiB resident with pipelining).
        block_cols = max(_LANE, ((512 * 1024) // itemsize) // _LANE * _LANE)

    grid = (pl.cdiv(n, block_cols),)
    out2d = pl.pallas_call(
        _squared_relu_kernel,
        out_shape=jax.ShapeDtypeStruct((1, n), dtype),
        grid=grid,
        in_specs=[pl.BlockSpec((1, block_cols), lambda i: (0, i))],
        out_specs=pl.BlockSpec((1, block_cols), lambda i: (0, i)),
        compiler_params=params,
        cost_estimate=cost,
    )(x2d)
    return out2d.reshape(orig_shape)


if __name__ == "__main__":
    key = jax.random.PRNGKey(0)

    # Primary small shape consistent with a transformer activation: (batch, seq, hidden)
    x = jax.random.normal(key, (2, 8, 32), dtype=jnp.float32)
    y = jax.block_until_ready(squared_relu(x))
    y_ref = jnp.square(jnp.maximum(x, 0.0))
    assert y.shape == x.shape and y.dtype == x.dtype
    assert jnp.allclose(y, y_ref, atol=1e-6, rtol=1e-6)

    # Extra checks: ragged fallback path, divisor fast path, bf16 fast path.
    for shape, dtype in (((3, 5, 7), jnp.float32),
                         ((4, 16, 160), jnp.float32),
                         ((2, 128, 256), jnp.bfloat16)):
        xi = jax.random.normal(jax.random.PRNGKey(1), shape, dtype=dtype)
        yi = jax.block_until_ready(squared_relu(xi))
        yi_ref = jnp.square(jnp.maximum(xi, 0)).astype(dtype)
        assert yi.shape == xi.shape and yi.dtype == xi.dtype
        tol = 1e-2 if dtype == jnp.bfloat16 else 1e-6
        assert jnp.allclose(yi.astype(jnp.float32), yi_ref.astype(jnp.float32),
                            atol=tol, rtol=tol)

    print("KERNEL_OK")
</pallas_src>

<mosaic_0001>
module attributes {stable_mosaic.version = 11 : i64} {
  func.func @_squared_relu_kernel(%arg0: i32, %arg1: memref<1x512xf32, #tpu.memory_space<vmem>>, %arg2: memref<1x512xf32, #tpu.memory_space<vmem>>) attributes {dimension_semantics = [#tpu.dimension_semantics<parallel>], iteration_bounds = array<i64: 1>, scalar_prefetch = 0 : i64, scratch_operands = 0 : i64, tpu.core_type = #tpu.core_type<tc>, window_params = [{transform_indices = @transform_0, window_bounds = array<i64: 1, 512>}, {transform_indices = @transform_1, window_bounds = array<i64: 1, 512>}]} {
    %c0 = arith.constant 0 : index
    %c0_0 = arith.constant 0 : index
    %0 = vector.load %arg1[%c0, %c0_0] : memref<1x512xf32, #tpu.memory_space<vmem>>, vector<1x512xf32>
    %cst = arith.constant 0.000000e+00 : f32
    %1 = vector.broadcast %cst : f32 to vector<1x512xf32>
    %2 = arith.maximumf %0, %1 : vector<1x512xf32>
    %3 = arith.mulf %2, %2 : vector<1x512xf32>
    %c0_1 = arith.constant 0 : index
    %c0_2 = arith.constant 0 : index
    %4 = vector.load %arg2[%c0_1, %c0_2] : memref<1x512xf32, #tpu.memory_space<vmem>>, vector<1x512xf32>
    tpu.vector_store %arg2[%c0_1, %c0_2], %3 {strides = array<i32>} : memref<1x512xf32, #tpu.memory_space<vmem>>, vector<1x512xf32>,
    return
  }
  func.func @transform_0(%arg0: i32) -> (i32, i32) {
    %c0_i32 = arith.constant 0 : i32
    %c0_i32_0 = arith.constant 0 : i32
    return %arg0, %c0_i32 : i32, i32
  }
  func.func @transform_1(%arg0: i32) -> (i32, i32) {
    %c0_i32 = arith.constant 0 : i32
    %c0_i32_0 = arith.constant 0 : i32
    return %arg0, %c0_i32 : i32, i32
  }
}

</mosaic_0001>

<llo_original>
// kernel: tpu_custom_call.1
$region0: #{tpu_custom_call.1}
  #allocation0 [shape = 'u32[]', space=smem, size = 0x4, offset = 0x4, fixed_abs, tag = 'smem constant byte address 0x4 - core index']
  #allocation1 [shape = 'u32[144,128]{1,0:T(1,128)}', space=vmem, size = 0x12000, scoped, tag = 'internal scratch']
  %s0 = inlined_call_operand.hbm [shape: f32[1,512], index: 0, kind: input, shape index: {}]
  %s1 = inlined_call_operand.hbm [shape: f32[1,512], index: 1, kind: output, shape index: {}]
  %s2 = sld [smem:[#allocation0]]
  $region18: #{tpu_custom_call.1} parent=0
    _
  %s4 = ssub.s32 1, %s2
  %s5 = scalar_select 0, %s4, %s2
  $region1: #{tpu_custom_call.1} parent=0
    #allocation2 [shape = 'u8[2048]{0}', space=vmem, size = 0x800, scoped, tag = 'input window, operand 0, single buffered']
    #allocation3 [shape = 's32[1]{0}', space=sflag, size = 0x4, scoped, tag = 'scoped memory for tpu_custom_call.1']
    #allocation4 [shape = 's32[1]{0}', space=sflag, size = 0x4, scoped, tag = 'scoped memory for tpu_custom_call.1']
    #allocation5 [shape = 'u8[2048]{0}', space=vmem, size = 0x800, scoped, tag = 'output window, operand 0, single buffered']
    %6 = vsyncpa [#allocation3], 0
    %7 = vsyncpa [#allocation4], 0
    // Predicated region
    $region2: #{tpu_custom_call.1} parent=1 // pred_check
      _
    $region3: #{tpu_custom_call.1} parent=1 // pred_check_branch
      %9 = sbr.rel (0) target = $region5
    $region4: #{tpu_custom_call.1} parent=1 // pred_region
      %s11 = ssub.s32 64, 64
      %12 = vsyncadd [#allocation3], %s11
      %s14 = sshll.u32 [#allocation2], 4
      %s15 = int_to_ptr.vmem [resolvable:$true] %s14
      %17 = dma.hbm_to_vmem [thread:$0]  %s0, 64, %s15, [#allocation3]
    $region5: #{tpu_custom_call.1} parent=1 // pred_fallthru
      _
    // Predicated region
    $region6: #{tpu_custom_call.1} parent=1 // pred_check
      _
    $region7: #{tpu_custom_call.1} parent=1 // pred_check_branch
      %19 = sbr.rel (0) target = $region9
    $region8: #{tpu_custom_call.1} parent=1 // pred_region
      %20 = dma.done [#allocation3], 64
    $region9: #{tpu_custom_call.1} parent=1 // pred_fallthru
      _
    %v21 = vld [vmem:[#allocation2] sm:$0xf]
    %v22 = vmax.f32 %v21, 0.0
    %v23 = vmul.f32 %v22, %v22
    %v24 = vlaneseq
    %vm25 = vcmp.ge.s32.totalorder %v24, 0
    %vm26 = vcmp.lt.s32.totalorder %v24, 512
    %vm27 = vmand %vm25, %vm26
    %28 = vst.msk [vmem:[#allocation5] sm:$0xf] %vm27, %v23
    // Predicated region
    $region10: #{tpu_custom_call.1} parent=1 // pred_check
      _
    $region11: #{tpu_custom_call.1} parent=1 // pred_check_branch
      %30 = sbr.rel (0) target = $region13
    $region12: #{tpu_custom_call.1} parent=1 // pred_region
      %s32 = ssub.s32 64, 64
      %33 = vsyncadd [#allocation4], %s32
      %s35 = sshll.u32 [#allocation5], 4
      %s36 = int_to_ptr.vmem [resolvable:$true] %s35
      %38 = dma.vmem_to_hbm [thread:$0]  %s36, 64, %s1, [#allocation4]
    $region13: #{tpu_custom_call.1} parent=1 // pred_fallthru
      _
    // Predicated region
    $region14: #{tpu_custom_call.1} parent=1 // pred_check
      _
    $region15: #{tpu_custom_call.1} parent=1 // pred_check_branch
      %40 = sbr.rel (0) target = $region17
    $region16: #{tpu_custom_call.1} parent=1 // pred_region
      %41 = dma.done [#allocation4], 64
    $region17: #{tpu_custom_call.1} parent=1 // pred_fallthru
      _
    %42 = vsyncpa [#allocation3], 1
    %43 = vsyncpa [#allocation4], 1

</llo_original>
